<compile_context>
chip_gen: v7x
topology: tpu7x:2x2x1
jax: 0.10.0
libtpu: 0.0.40
codegen_flags: <defaults>
</compile_context>

<pallas_src>
import jax
import jax.numpy as jnp
from jax import lax
from jax.experimental import pallas as pl
from jax.experimental.pallas import tpu as pltpu


def _linear_add_kernel(x_ref, w_ref, b_ref, other_ref, o_ref):
    # x: (M, IN), w: (OUT, IN) PyTorch layout, b: (1, OUT), other: (M, OUT)
    # Contract last dim of x with last dim of w (no transpose materialized).
    acc = lax.dot_general(
        x_ref[...], w_ref[...],
        dimension_numbers=(((1,), (1,)), ((), ())),
        preferred_element_type=jnp.float32,
    )
    o_ref[...] = (acc + b_ref[...] + other_ref[...]).astype(o_ref.dtype)


def linear_add(x1, weight, bias, other):
    """Computes Linear(x1) + other, matching torch.nn.Linear semantics.

    x1:     (B, S, IN)  float32
    weight: (OUT, IN)   float32   (PyTorch layout, used as-is)
    bias:   (OUT,)      float32
    other:  broadcastable to (B, S, OUT)
    """
    B, S, IN = x1.shape
    OUT = weight.shape[0]
    M = B * S

    x2d = x1.reshape(M, IN)
    other2d = jnp.broadcast_to(other, (B, S, OUT)).reshape(M, OUT).astype(x1.dtype)
    b2d = bias.reshape(1, OUT).astype(x1.dtype)
    w = weight.astype(x1.dtype)

    vmem = pl.BlockSpec(memory_space=pltpu.MemorySpace.VMEM)

    itemsize = jnp.dtype(x1.dtype).itemsize
    cost = pl.CostEstimate(
        flops=2 * M * IN * OUT,
        transcendentals=0,
        bytes_accessed=itemsize * (M * IN + OUT * IN + OUT + 2 * M * OUT),
    )

    out2d = pl.pallas_call(
        _linear_add_kernel,
        out_shape=jax.ShapeDtypeStruct((M, OUT), x1.dtype),
        in_specs=[vmem, vmem, vmem, vmem],
        out_specs=vmem,
        input_output_aliases={3: 0},  # reuse `other`'s buffer for the output
        cost_estimate=cost,
    )(x2d, w, b2d, other2d)

    return out2d.reshape(B, S, OUT)


if __name__ == "__main__":
    key = jax.random.PRNGKey(0)
    k_x, k_other, k_w, k_b = jax.random.split(key, 4)

    B, S, IN, OUT = 1, 4, 5, 3

    # Deterministic parameter init (mimic nn.Linear's uniform(-1/sqrt(IN), 1/sqrt(IN)))
    bound = 1.0 / (IN ** 0.5)
    weight = jax.random.uniform(k_w, (OUT, IN), jnp.float32, -bound, bound)
    bias = jax.random.uniform(k_b, (OUT,), jnp.float32, -bound, bound)

    x1 = jax.random.normal(k_x, (B, S, IN), jnp.float32)
    other = jax.random.normal(k_other, (B, S, OUT), jnp.float32)

    # Reference computed first (the kernel aliases its additive operand's buffer).
    ref = x1 @ weight.T + bias + other

    out = linear_add(x1, weight, bias, other)
    out = jax.block_until_ready(out)

    assert out.shape == (B, S, OUT)
    assert jnp.allclose(out, ref, atol=1e-5, rtol=1e-5)

    print("KERNEL_OK")
</pallas_src>

<mosaic_0001>
module attributes {stable_mosaic.version = 11 : i64} {
  func.func @_linear_add_kernel(%arg0: memref<4x5xf32, #tpu.memory_space<vmem>>, %arg1: memref<3x5xf32, #tpu.memory_space<vmem>>, %arg2: memref<1x3xf32, #tpu.memory_space<vmem>>, %arg3: memref<4x3xf32, #tpu.memory_space<vmem>>, %arg4: memref<4x3xf32, #tpu.memory_space<vmem>>) attributes {dimension_semantics = [], scalar_prefetch = 0 : i64, scratch_operands = 0 : i64, tpu.core_type = #tpu.core_type<tc>} {
    %c0 = arith.constant 0 : index
    %c0_0 = arith.constant 0 : index
    %0 = vector.load %arg0[%c0, %c0_0] : memref<4x5xf32, #tpu.memory_space<vmem>>, vector<4x5xf32>
    %c0_1 = arith.constant 0 : index
    %c0_2 = arith.constant 0 : index
    %1 = vector.load %arg1[%c0_1, %c0_2] : memref<3x5xf32, #tpu.memory_space<vmem>>, vector<3x5xf32>
    %cst = arith.constant dense<0.000000e+00> : vector<4x3xf32>
    %2 = tpu.matmul %0, %1, %cst {dimension_numbers = #tpu.dot_dimension_numbers<[1], [1], [0], [0], [0, 0, 1, 0], [], []>} : vector<4x5xf32>, vector<3x5xf32>, vector<4x3xf32> -> vector<4x3xf32>
    %c0_3 = arith.constant 0 : index
    %c0_4 = arith.constant 0 : index
    %3 = vector.load %arg2[%c0_3, %c0_4] : memref<1x3xf32, #tpu.memory_space<vmem>>, vector<1x3xf32>
    %4 = vector.broadcast %3 : vector<1x3xf32> to vector<4x3xf32>
    %5 = arith.addf %2, %4 : vector<4x3xf32>
    %c0_5 = arith.constant 0 : index
    %c0_6 = arith.constant 0 : index
    %6 = vector.load %arg3[%c0_5, %c0_6] : memref<4x3xf32, #tpu.memory_space<vmem>>, vector<4x3xf32>
    %7 = arith.addf %5, %6 : vector<4x3xf32>
    %c0_7 = arith.constant 0 : index
    %c0_8 = arith.constant 0 : index
    %8 = vector.load %arg4[%c0_7, %c0_8] : memref<4x3xf32, #tpu.memory_space<vmem>>, vector<4x3xf32>
    tpu.vector_store %arg4[%c0_7, %c0_8], %7 {strides = array<i32>} : memref<4x3xf32, #tpu.memory_space<vmem>>, vector<4x3xf32>,
    return
  }
}

</mosaic_0001>

<llo_original>
// kernel: tpu_custom_call.1
$region0: #{tpu_custom_call.1}
  #allocation0 [shape = 'u32[]', space=smem, size = 0x4, offset = 0x4, fixed_abs, tag = 'smem constant byte address 0x4 - core index']
  #allocation1 [shape = 'u32[144,128]{1,0:T(1,128)}', space=vmem, size = 0x12000, scoped, tag = 'internal scratch']
  %s0 = inlined_call_operand.vmem [shape: f32[4,5], index: 0, kind: input, shape index: {}]
  %s1 = inlined_call_operand.vmem [shape: f32[3,5], index: 1, kind: input, shape index: {}]
  %s2 = inlined_call_operand.vmem [shape: f32[1,3], index: 2, kind: input, shape index: {}]
  %s3 = inlined_call_operand.hbm [shape: f32[4,3], index: 3, kind: input, shape index: {}, may-alias: {3,4}]
  %s4 = inlined_call_operand.hbm [shape: f32[4,3], index: 4, kind: output, shape index: {}, may-alias: {3,4}]
  %s5 = sld [smem:[#allocation0]]
  $region30: #{tpu_custom_call.1} parent=0
    _
  %s7 = ssub.s32 1, %s5
  %s8 = scalar_select 0, %s7, %s5
  $region1: #{tpu_custom_call.1} parent=0
    #allocation2 [shape = 'u8[2048]{0}', space=vmem, size = 0x800, scoped, tag = 'input window, operand 3, single buffered']
    #allocation3 [shape = 's32[1]{0}', space=sflag, size = 0x4, scoped, tag = 'scoped memory for tpu_custom_call.1']
    #allocation4 [shape = 's32[1]{0}', space=sflag, size = 0x4, scoped, tag = 'scoped memory for tpu_custom_call.1']
    #allocation5 [shape = 'u8[2048]{0}', space=vmem, size = 0x800, scoped, tag = 'output window, operand 0, single buffered']
    %9 = vsyncpa [#allocation3], 0
    %10 = vsyncpa [#allocation4], 0
    // Predicated region
    $region2: #{tpu_custom_call.1} parent=1 // pred_check
      _
    $region3: #{tpu_custom_call.1} parent=1 // pred_check_branch
      %12 = sbr.rel (0) target = $region5
    $region4: #{tpu_custom_call.1} parent=1 // pred_region
      _
    $region5: #{tpu_custom_call.1} parent=1 // pred_fallthru
      _
    // Predicated region
    $region6: #{tpu_custom_call.1} parent=1 // pred_check
      _
    $region7: #{tpu_custom_call.1} parent=1 // pred_check_branch
      %14 = sbr.rel (0) target = $region9
    $region8: #{tpu_custom_call.1} parent=1 // pred_region
      _
    $region9: #{tpu_custom_call.1} parent=1 // pred_fallthru
      _
    // Predicated region
    $region10: #{tpu_custom_call.1} parent=1 // pred_check
      _
    $region11: #{tpu_custom_call.1} parent=1 // pred_check_branch
      %16 = sbr.rel (0) target = $region13
    $region12: #{tpu_custom_call.1} parent=1 // pred_region
      _
    $region13: #{tpu_custom_call.1} parent=1 // pred_fallthru
      _
    // Predicated region
    $region14: #{tpu_custom_call.1} parent=1 // pred_check
      _
    $region15: #{tpu_custom_call.1} parent=1 // pred_check_branch
      %18 = sbr.rel (0) target = $region17
    $region16: #{tpu_custom_call.1} parent=1 // pred_region
      %s20 = ssub.s32 64, 64
      %21 = vsyncadd [#allocation3], %s20
      %s23 = sshll.u32 [#allocation2], 4
      %s24 = int_to_ptr.vmem [resolvable:$true] %s23
      %26 = dma.hbm_to_vmem [thread:$0]  %s3, 64, %s24, [#allocation3]
    $region17: #{tpu_custom_call.1} parent=1 // pred_fallthru
      _
    // Predicated region
    $region18: #{tpu_custom_call.1} parent=1 // pred_check
      _
    $region19: #{tpu_custom_call.1} parent=1 // pred_check_branch
      %28 = sbr.rel (0) target = $region21
    $region20: #{tpu_custom_call.1} parent=1 // pred_region
      %29 = dma.done [#allocation3], 64
    $region21: #{tpu_custom_call.1} parent=1 // pred_fallthru
      _
    %v30 = vld [vmem:[%s0] sm:$0xf]
    %v31 = vld [vmem:[%s1] sm:$0x7]
    %v32 = vld [vmem:[%s2] sm:$0x1]
    %v34 = vlaneseq
    %v35 = vshrl.u32 %v34, 7
    %v36 = vsub.s32 0, %v35
    %v37 = vrot.slane %v32, %v36
    %vm39 = vcmask 39936
    %v41 = vsel %vm39, %v30, 0
    %v44 = vsel %vm39, %v31, 0
    %46 = vmatprep.subr.mxu0 0.0
    %47 = vmatpush1.xpose.msra.mxu0 %v44
    %48 = vmatprep.subr.mxu0 0.0
    %49 = vmatpush1.xpose.msra.mxu0 0.0
    %50 = vmatprep.subr.mxu0 0.0
    %51 = vmatpush1.xpose.msra.mxu0 0.0
    %52 = vmatprep.subr.mxu0 0.0
    %53 = vmatpush1.xpose.msra.mxu0 0.0
    %54 = vmatprep.subr.mxu0 0.0
    %55 = vmatpush1.xpose.msra.mxu0 0.0
    %56 = vmatprep.subr.mxu0 0.0
    %57 = vmatpush1.xpose.msra.mxu0 0.0
    %58 = vmatprep.subr.mxu0 0.0
    %59 = vmatpush1.xpose.msra.mxu0 0.0
    %60 = vmatprep.subr.mxu0 0.0
    %61 = vmatpush1.xpose.msra.mxu0 0.0
    %62 = vmatprep.subr.mxu0 0.0
    %63 = vmatpush1.xpose.msra.mxu0 0.0
    %64 = vmatprep.subr.mxu0 0.0
    %65 = vmatpush1.xpose.msra.mxu0 0.0
    %66 = vmatprep.subr.mxu0 0.0
    %67 = vmatpush1.xpose.msra.mxu0 0.0
    %68 = vmatprep.subr.mxu0 0.0
    %69 = vmatpush1.xpose.msra.mxu0 0.0
    %70 = vmatprep.subr.mxu0 0.0
    %71 = vmatpush1.xpose.msra.mxu0 0.0
    %72 = vmatprep.subr.mxu0 0.0
    %73 = vmatpush1.xpose.msra.mxu0 0.0
    %74 = vmatprep.subr.mxu0 0.0
    %75 = vmatpush1.xpose.msra.mxu0 0.0
    %76 = vmatprep.subr.mxu0 0.0
    %77 = vmatpush1.xpose.msra.mxu0 0.0
    %78 = vmatprep.subr.mxu0 0.0
    %79 = vmatpush1.xpose.msra.mxu0 0.0
    %80 = vmatprep.subr.mxu0 0.0
    %81 = vmatpush1.xpose.msra.mxu0 0.0
    %82 = vmatprep.subr.mxu0 0.0
    %83 = vmatpush1.xpose.msra.mxu0 0.0
    %84 = vmatprep.subr.mxu0 0.0
    %85 = vmatpush1.xpose.msra.mxu0 0.0
    %86 = vmatprep.subr.mxu0 0.0
    %87 = vmatpush1.xpose.msra.mxu0 0.0
    %88 = vmatprep.subr.mxu0 0.0
    %89 = vmatpush1.xpose.msra.mxu0 0.0
    %90 = vmatprep.subr.mxu0 0.0
    %91 = vmatpush1.xpose.msra.mxu0 0.0
    %92 = vmatprep.subr.mxu0 0.0
    %93 = vmatpush1.xpose.msra.mxu0 0.0
    %94 = vmatprep.subr.mxu0 0.0
    %95 = vmatpush1.xpose.msra.mxu0 0.0
    %96 = vmatprep.subr.mxu0 0.0
    %97 = vmatpush1.xpose.msra.mxu0 0.0
    %98 = vmatprep.subr.mxu0 0.0
    %99 = vmatpush1.xpose.msra.mxu0 0.0
    %100 = vmatprep.subr.mxu0 0.0
    %101 = vmatpush1.xpose.msra.mxu0 0.0
    %102 = vmatprep.subr.mxu0 0.0
    %103 = vmatpush1.xpose.msra.mxu0 0.0
    %104 = vmatprep.subr.mxu0 0.0
    %105 = vmatpush1.xpose.msra.mxu0 0.0
    %106 = vmatprep.subr.mxu0 0.0
    %107 = vmatpush1.xpose.msra.mxu0 0.0
    %108 = vmatprep.subr.mxu0 0.0
    %109 = vmatpush1.xpose.msra.mxu0 0.0
    %110 = vmatprep.mubr.f32.mxu0 0.0
    %111 = vmatmul.mubr.f32.gmra.mrb[0].mxu0 %v41
    %v112 = vpop.f32.mrb[0].mxu0
    %v113 = vadd.f32 %v37, %v112
    %v114 = vpop.f32.mrb[0].mxu0
    %115 = vdwg.mxu0
    %v116 = vld [vmem:[#allocation2] sm:$0xf]
    %v117 = vadd.f32 %v113, %v116
    %vm118 = vcmask 19456
    %119 = vst.msk [vmem:[#allocation5] sm:$0xf] %vm118, %v117
    // Predicated region
    $region22: #{tpu_custom_call.1} parent=1 // pred_check
      _
    $region23: #{tpu_custom_call.1} parent=1 // pred_check_branch
      %121 = sbr.rel (0) target = $region25
    $region24: #{tpu_custom_call.1} parent=1 // pred_region
      %s123 = ssub.s32 64, 64
      %124 = vsyncadd [#allocation4], %s123
      %s126 = sshll.u32 [#allocation5], 4
      %s127 = int_to_ptr.vmem [resolvable:$true] %s126
      %129 = dma.vmem_to_hbm [thread:$0]  %s127, 64, %s4, [#allocation4]
    $region25: #{tpu_custom_call.1} parent=1 // pred_fallthru
      _
    // Predicated region
    $region26: #{tpu_custom_call.1} parent=1 // pred_check
      _
    $region27: #{tpu_custom_call.1} parent=1 // pred_check_branch
      %131 = sbr.rel (0) target = $region29
    $region28: #{tpu_custom_call.1} parent=1 // pred_region
      %132 = dma.done [#allocation4], 64
    $region29: #{tpu_custom_call.1} parent=1 // pred_fallthru
      _
    %133 = vsyncpa [#allocation3], 1
    %134 = vsyncpa [#allocation4], 1

</llo_original>
